<compile_context>
chip_gen: v7x
topology: tpu7x:2x2x1
jax: 0.10.0
libtpu: 0.0.40
codegen_flags: <defaults>
</compile_context>

<pallas_src>
import numpy as np
import jax
import jax.numpy as jnp
from jax.experimental import pallas as pl
from jax.experimental.pallas import tpu as pltpu


# ----------------------------------------------------------------------------
# "Module" setup — deterministic, mirrors shark.__init__
# ----------------------------------------------------------------------------
UNIQUE_VALUES = [3, 5, 4, 2]                       # cardinality per feature
FEATURES = np.array(["f0", "f1", "f2", "f3"])      # feature names
FEATURE_NUM = len(UNIQUE_VALUES)
OFFSETS = np.array((0, *np.cumsum(UNIQUE_VALUES)[:-1]), dtype=np.int32)
# TODO(synk): BCELoss / save_selection (gradient-based feature importance) are
# training-time utilities, not part of forward(); not translated.


_LANES = 128          # vreg lane width (fast axis)
_TILE_ROWS = 1024     # 1024 x 128 x 4 B = 512 KiB per tile buffer


# ----------------------------------------------------------------------------
# Pallas lane-dense copy kernel (identity)
# ----------------------------------------------------------------------------
def _copy_kernel(x_ref, o_ref):
    o_ref[...] = x_ref[...]


def shark_forward(x, current_epoch=None, current_step=None, raw_data=None,
                  validation=False):
    """Pallas implementation of shark.forward — returns x unchanged."""
    B, F = x.shape
    total = B * F

    # Present a lane-dense (rows, 128) slab to the kernel; pad only if needed.
    rows = max(pl.cdiv(total, _LANES), 1)
    tile_rows = min(_TILE_ROWS, ((rows + 7) // 8) * 8)       # (8,128)-aligned
    padded_rows = pl.cdiv(rows, tile_rows) * tile_rows
    padded_total = padded_rows * _LANES

    flat = x.reshape(-1)
    if padded_total != total:
        flat = jnp.pad(flat, (0, padded_total - total))
    slab = flat.reshape(padded_rows, _LANES)

    out_slab = pl.pallas_call(
        _copy_kernel,
        out_shape=jax.ShapeDtypeStruct((padded_rows, _LANES), x.dtype),
        grid=(padded_rows // tile_rows,),
        in_specs=[pl.BlockSpec((tile_rows, _LANES), lambda i: (i, 0))],
        out_specs=pl.BlockSpec((tile_rows, _LANES), lambda i: (i, 0)),
        input_output_aliases={0: 0},
        compiler_params=pltpu.CompilerParams(
            dimension_semantics=("parallel",)),
        cost_estimate=pl.CostEstimate(
            flops=0, transcendentals=0,
            bytes_accessed=2 * padded_total * x.dtype.itemsize),
    )(slab)

    return out_slab.reshape(-1)[:total].reshape(B, F)


# ----------------------------------------------------------------------------
# Driver
# ----------------------------------------------------------------------------
if __name__ == "__main__":
    key = jax.random.PRNGKey(0)
    batch = 8
    # x: per-feature categorical indices in [0, unique_values[j])
    maxvals = jnp.asarray(UNIQUE_VALUES, dtype=jnp.int32)
    raw = jax.random.randint(key, (batch, FEATURE_NUM), 0, 1_000, dtype=jnp.int32)
    x = raw % maxvals[None, :]

    y = shark_forward(x, current_epoch=0, current_step=0, raw_data=None)
    y = jax.block_until_ready(y)

    assert y.shape == x.shape and y.dtype == x.dtype
    assert bool(jnp.all(y == x))
    print("KERNEL_OK")
</pallas_src>

<mosaic_0001>
module attributes {stable_mosaic.version = 11 : i64} {
  func.func @_copy_kernel(%arg0: i32, %arg1: memref<8x128xi32, #tpu.memory_space<vmem>>, %arg2: memref<8x128xi32, #tpu.memory_space<vmem>>) attributes {dimension_semantics = [#tpu.dimension_semantics<parallel>], iteration_bounds = array<i64: 1>, scalar_prefetch = 0 : i64, scratch_operands = 0 : i64, tpu.core_type = #tpu.core_type<tc>, window_params = [{transform_indices = @transform_0, window_bounds = array<i64: 8, 128>}, {transform_indices = @transform_1, window_bounds = array<i64: 8, 128>}]} {
    %c0 = arith.constant 0 : index
    %c0_0 = arith.constant 0 : index
    %0 = vector.load %arg1[%c0, %c0_0] : memref<8x128xi32, #tpu.memory_space<vmem>>, vector<8x128xi32>
    %c0_1 = arith.constant 0 : index
    %c0_2 = arith.constant 0 : index
    %1 = vector.load %arg2[%c0_1, %c0_2] : memref<8x128xi32, #tpu.memory_space<vmem>>, vector<8x128xi32>
    tpu.vector_store %arg2[%c0_1, %c0_2], %0 {strides = array<i32>} : memref<8x128xi32, #tpu.memory_space<vmem>>, vector<8x128xi32>,
    return
  }
  func.func @transform_0(%arg0: i32) -> (i32, i32) {
    %c0_i32 = arith.constant 0 : i32
    %c0_i32_0 = arith.constant 0 : i32
    return %arg0, %c0_i32 : i32, i32
  }
  func.func @transform_1(%arg0: i32) -> (i32, i32) {
    %c0_i32 = arith.constant 0 : i32
    %c0_i32_0 = arith.constant 0 : i32
    return %arg0, %c0_i32 : i32, i32
  }
}

</mosaic_0001>

<llo_original>
// kernel: tpu_custom_call.1
$region0: #{tpu_custom_call.1}
  #allocation0 [shape = 'u32[]', space=smem, size = 0x4, offset = 0x4, fixed_abs, tag = 'smem constant byte address 0x4 - core index']
  #allocation1 [shape = 'u32[144,128]{1,0:T(1,128)}', space=vmem, size = 0x12000, scoped, tag = 'internal scratch']
  %s0 = inlined_call_operand.hbm [shape: s32[8,128], index: 0, kind: input, shape index: {}, may-alias: {0,1}]
  %s1 = inlined_call_operand.hbm [shape: s32[8,128], index: 1, kind: output, shape index: {}, may-alias: {0,1}]
  %s2 = sld [smem:[#allocation0]]
  $region18: #{tpu_custom_call.1} parent=0
    _
  %s4 = ssub.s32 1, %s2
  %s5 = scalar_select 0, %s4, %s2
  $region1: #{tpu_custom_call.1} parent=0
    #allocation2 [shape = 'u8[4096]{0}', space=vmem, size = 0x1000, scoped, tag = 'input window, operand 0, single buffered']
    #allocation3 [shape = 's32[1]{0}', space=sflag, size = 0x4, scoped, tag = 'scoped memory for tpu_custom_call.1']
    #allocation4 [shape = 's32[1]{0}', space=sflag, size = 0x4, scoped, tag = 'scoped memory for tpu_custom_call.1']
    #allocation5 [shape = 'u8[4096]{0}', space=vmem, size = 0x1000, scoped, tag = 'output window, operand 0, single buffered']
    %6 = vsyncpa [#allocation3], 0
    %7 = vsyncpa [#allocation4], 0
    // Predicated region
    $region2: #{tpu_custom_call.1} parent=1 // pred_check
      _
    $region3: #{tpu_custom_call.1} parent=1 // pred_check_branch
      %9 = sbr.rel (0) target = $region5
    $region4: #{tpu_custom_call.1} parent=1 // pred_region
      %s11 = ssub.s32 128, 128
      %12 = vsyncadd [#allocation3], %s11
      %s14 = sshll.u32 [#allocation2], 4
      %s15 = int_to_ptr.vmem [resolvable:$true] %s14
      %17 = dma.hbm_to_vmem [thread:$0]  %s0, 128, %s15, [#allocation3]
    $region5: #{tpu_custom_call.1} parent=1 // pred_fallthru
      _
    // Predicated region
    $region6: #{tpu_custom_call.1} parent=1 // pred_check
      _
    $region7: #{tpu_custom_call.1} parent=1 // pred_check_branch
      %19 = sbr.rel (0) target = $region9
    $region8: #{tpu_custom_call.1} parent=1 // pred_region
      %20 = dma.done [#allocation3], 128
    $region9: #{tpu_custom_call.1} parent=1 // pred_fallthru
      _
    %v21 = vld [vmem:[#allocation2] sm:$0xff]
    %22 = vst [vmem:[#allocation5] sm:$0xff] %v21
    // Predicated region
    $region10: #{tpu_custom_call.1} parent=1 // pred_check
      _
    $region11: #{tpu_custom_call.1} parent=1 // pred_check_branch
      %24 = sbr.rel (0) target = $region13
    $region12: #{tpu_custom_call.1} parent=1 // pred_region
      %s26 = ssub.s32 128, 128
      %27 = vsyncadd [#allocation4], %s26
      %s29 = sshll.u32 [#allocation5], 4
      %s30 = int_to_ptr.vmem [resolvable:$true] %s29
      %32 = dma.vmem_to_hbm [thread:$0]  %s30, 128, %s1, [#allocation4]
    $region13: #{tpu_custom_call.1} parent=1 // pred_fallthru
      _
    // Predicated region
    $region14: #{tpu_custom_call.1} parent=1 // pred_check
      _
    $region15: #{tpu_custom_call.1} parent=1 // pred_check_branch
      %34 = sbr.rel (0) target = $region17
    $region16: #{tpu_custom_call.1} parent=1 // pred_region
      %35 = dma.done [#allocation4], 128
    $region17: #{tpu_custom_call.1} parent=1 // pred_fallthru
      _
    %36 = vsyncpa [#allocation3], 1
    %37 = vsyncpa [#allocation4], 1

</llo_original>
